<compile_context>
chip_gen: v5e
topology: v5e:2x2
jax: 0.10.0
libtpu: 0.0.40
codegen_flags: <defaults>
</compile_context>

<pallas_src>
import functools

import jax
import jax.numpy as jnp
from jax.experimental import pallas as pl
from jax.experimental.pallas import tpu as pltpu

BN_EPS = 1e-5


# ----------------------------------------------------------------------------
# Fused kernel: operates on one batch element in (channels, H*W) layout.
# ----------------------------------------------------------------------------
def _btnk2_kernel(x_ref, w1_ref, b1_ref, w2_ref, b2_ref, w3_ref, b3_ref,
                  mask_ref, o_ref, *, W):
    x = x_ref[...]                                                   # (C, HW)
    HW = x.shape[1]

    # ---- conv2d_1 (1x1, BN1 scale pre-folded into w1) + bias + ReLU ----
    y1 = jnp.dot(w1_ref[...], x, preferred_element_type=jnp.float32)  # (mid, HW)
    y1 = jnp.maximum(y1 + b1_ref[...], 0.0)

    # ---- conv2d_2 (3x3, padding=1, BN2 scale pre-folded): centre tap
    #      initialises the accumulator; the 8 neighbour taps are generated
    #      in-VMEM via XLU lane rolls + constant 0/1 border masks, each
    #      contracted over input channels on the MXU and accumulated. ----
    acc = jnp.dot(w2_ref[4], y1, preferred_element_type=jnp.float32)  # centre
    for kh in range(3):
        for kw in range(3):
            k = kh * 3 + kw
            if k == 4:
                continue
            s = (kh - 1) * W + (kw - 1)          # flattened spatial shift
            # tap[p] = y1[p + s] for valid positions, 0 at image borders.
            tap = pltpu.roll(y1, shift=(-s) % HW, axis=1) * mask_ref[k]
            acc = acc + jnp.dot(w2_ref[k], tap,
                                preferred_element_type=jnp.float32)
    y2 = jnp.maximum(acc + b2_ref[...], 0.0)                          # bias+ReLU

    # ---- conv2d_3 (1x1, BN3 scale pre-folded) + bias + residual + ReLU ----
    y3 = jnp.dot(w3_ref[...], y2, preferred_element_type=jnp.float32)
    o_ref[...] = jnp.maximum(y3 + b3_ref[...] + x, 0.0)


# ----------------------------------------------------------------------------
# Host-side helpers (parameter folding / constant masks) + pallas_call wiring.
# ----------------------------------------------------------------------------
def _fold_bn(w, conv_b, gamma, beta, mean, var, out_axis=0):
    """Fold eval-mode BatchNorm into the conv weight and a per-channel bias."""
    f32 = jnp.float32
    inv = (gamma * jax.lax.rsqrt(var + BN_EPS)).astype(f32)          # (out,)
    shape = [1] * w.ndim
    shape[out_axis] = -1
    w_folded = w.astype(f32) * inv.reshape(shape)
    bias = (beta + (conv_b - mean) * inv).reshape(-1, 1).astype(f32)  # (out,1)
    return w_folded, bias


def _make_border_masks(H, W):
    """0/1 masks (9, 1, H*W): validity of the source pixel for each 3x3 tap."""
    pos = jnp.arange(H * W, dtype=jnp.int32)
    hh = pos // W
    ww = pos % W
    masks = []
    for kh in range(3):
        for kw in range(3):
            dh, dw = kh - 1, kw - 1
            ok = ((hh + dh >= 0) & (hh + dh <= H - 1) &
                  (ww + dw >= 0) & (ww + dw <= W - 1))
            masks.append(ok.astype(jnp.float32))
    return jnp.stack(masks, axis=0).reshape(9, 1, H * W)


def btnk2_forward(x_nchw, params):
    N, C, H, W = x_nchw.shape
    mid = C // 4
    HW = H * W
    f32 = jnp.float32

    x = x_nchw.reshape(N, C, HW).astype(f32)       # pure reshape, no transpose

    w1, b1 = _fold_bn(params["conv1_w"].reshape(mid, C), params["conv1_b"],
                      params["bn1_g"], params["bn1_b"],
                      params["bn1_m"], params["bn1_v"], out_axis=0)
    # (mid_out, mid_in, 3, 3) -> (9, mid_out, mid_in), tap index k = kh*3 + kw
    w2_taps = params["conv2_w"].transpose(2, 3, 0, 1).reshape(9, mid, mid)
    w2, b2 = _fold_bn(w2_taps, params["conv2_b"],
                      params["bn2_g"], params["bn2_b"],
                      params["bn2_m"], params["bn2_v"], out_axis=1)
    w3, b3 = _fold_bn(params["conv3_w"].reshape(C, mid), params["conv3_b"],
                      params["bn3_g"], params["bn3_b"],
                      params["bn3_m"], params["bn3_v"], out_axis=0)
    masks = _make_border_masks(H, W)

    kernel = functools.partial(_btnk2_kernel, W=W)
    out = pl.pallas_call(
        kernel,
        out_shape=jax.ShapeDtypeStruct((N, C, HW), f32),
        grid=(N,),
        in_specs=[
            pl.BlockSpec((None, C, HW), lambda n: (n, 0, 0)),    # x
            pl.BlockSpec((mid, C), lambda n: (0, 0)),            # w1 (BN folded)
            pl.BlockSpec((mid, 1), lambda n: (0, 0)),            # bias1
            pl.BlockSpec((9, mid, mid), lambda n: (0, 0, 0)),    # w2 per tap
            pl.BlockSpec((mid, 1), lambda n: (0, 0)),            # bias2
            pl.BlockSpec((C, mid), lambda n: (0, 0)),            # w3 (BN folded)
            pl.BlockSpec((C, 1), lambda n: (0, 0)),              # bias3
            pl.BlockSpec((9, 1, HW), lambda n: (0, 0, 0)),       # border masks
        ],
        out_specs=pl.BlockSpec((None, C, HW), lambda n: (n, 0, 0)),
        compiler_params=pltpu.CompilerParams(
            dimension_semantics=("parallel",),
            vmem_limit_bytes=32 * 1024 * 1024),
    )(x, w1, b1, w2, b2, w3, b3, masks)

    return out.reshape(N, C, H, W)


# ----------------------------------------------------------------------------
# Deterministic parameter init (shapes follow the PyTorch module __init__).
# ----------------------------------------------------------------------------
def init_params(key, C):
    mid = C // 4
    ks = jax.random.split(key, 18)
    s = 0.1
    f = jnp.float32
    return {
        "conv1_w": s * jax.random.normal(ks[0], (mid, C, 1, 1), f),
        "conv1_b": s * jax.random.normal(ks[1], (mid,), f),
        "bn1_g": 1.0 + s * jax.random.normal(ks[2], (mid,), f),
        "bn1_b": s * jax.random.normal(ks[3], (mid,), f),
        "bn1_m": s * jax.random.normal(ks[4], (mid,), f),
        "bn1_v": 0.5 + jax.random.uniform(ks[5], (mid,), f),
        "conv2_w": s * jax.random.normal(ks[6], (mid, mid, 3, 3), f),
        "conv2_b": s * jax.random.normal(ks[7], (mid,), f),
        "bn2_g": 1.0 + s * jax.random.normal(ks[8], (mid,), f),
        "bn2_b": s * jax.random.normal(ks[9], (mid,), f),
        "bn2_m": s * jax.random.normal(ks[10], (mid,), f),
        "bn2_v": 0.5 + jax.random.uniform(ks[11], (mid,), f),
        "conv3_w": s * jax.random.normal(ks[12], (C, mid, 1, 1), f),
        "conv3_b": s * jax.random.normal(ks[13], (C,), f),
        "bn3_g": 1.0 + s * jax.random.normal(ks[14], (C,), f),
        "bn3_b": s * jax.random.normal(ks[15], (C,), f),
        "bn3_m": s * jax.random.normal(ks[16], (C,), f),
        "bn3_v": 0.5 + jax.random.uniform(ks[17], (C,), f),
    }


# Pure-JAX reference (eval-mode BN, same semantics as the kernel).
def _ref_forward(x, p):
    hp = jax.lax.Precision.HIGHEST

    def conv(x, w, b, pad=0):
        out = jax.lax.conv_general_dilated(
            x, w, (1, 1), [(pad, pad), (pad, pad)],
            dimension_numbers=("NCHW", "OIHW", "NCHW"), precision=hp)
        return out + b[None, :, None, None]

    def bn(x, g, bta, m, v):
        inv = jax.lax.rsqrt(v + BN_EPS)
        return ((x - m[None, :, None, None]) * (g * inv)[None, :, None, None]
                + bta[None, :, None, None])

    out = jax.nn.relu(bn(conv(x, p["conv1_w"], p["conv1_b"]),
                         p["bn1_g"], p["bn1_b"], p["bn1_m"], p["bn1_v"]))
    out = jax.nn.relu(bn(conv(out, p["conv2_w"], p["conv2_b"], pad=1),
                         p["bn2_g"], p["bn2_b"], p["bn2_m"], p["bn2_v"]))
    out = bn(conv(out, p["conv3_w"], p["conv3_b"]),
             p["bn3_g"], p["bn3_b"], p["bn3_m"], p["bn3_v"])
    return jax.nn.relu(out + x)


if __name__ == "__main__":
    N, C, H, W = 2, 8, 16, 16                        # in_channels divisible by 4

    key = jax.random.PRNGKey(0)
    kx, kp = jax.random.split(key)
    x = jax.random.normal(kx, (N, C, H, W), jnp.float32)
    params = init_params(kp, C)

    fwd = jax.jit(btnk2_forward)
    out = jax.block_until_ready(fwd(x, params))
    assert out.shape == (N, C, H, W)

    ref = jax.block_until_ready(_ref_forward(x, params))
    err = float(jnp.max(jnp.abs(out - ref)))
    assert jnp.allclose(out, ref, rtol=2e-3, atol=2e-3), f"mismatch, max abs err={err}"

    print("KERNEL_OK")
</pallas_src>

<mosaic_0001>
module attributes {stable_mosaic.version = 11 : i64} {
  func.func @_btnk2_kernel(%arg0: i32, %arg1: memref<1x8x256xf32, #tpu.memory_space<vmem>>, %arg2: memref<2x8xf32, #tpu.memory_space<vmem>>, %arg3: memref<2x1xf32, #tpu.memory_space<vmem>>, %arg4: memref<9x2x2xf32, #tpu.memory_space<vmem>>, %arg5: memref<2x1xf32, #tpu.memory_space<vmem>>, %arg6: memref<8x2xf32, #tpu.memory_space<vmem>>, %arg7: memref<8x1xf32, #tpu.memory_space<vmem>>, %arg8: memref<9x1x256xf32, #tpu.memory_space<vmem>>, %arg9: memref<1x8x256xf32, #tpu.memory_space<vmem>>) attributes {dimension_semantics = [#tpu.dimension_semantics<parallel>], iteration_bounds = array<i64: 2>, scalar_prefetch = 0 : i64, scratch_operands = 0 : i64, tpu.core_type = #tpu.core_type<tc>, window_params = [{transform_indices = @transform_0, window_bounds = array<i64: 1, 8, 256>}, {pipeline_mode = #tpu.pipeline_mode<synchronous>, transform_indices = @transform_1, window_bounds = array<i64: 2, 8>}, {pipeline_mode = #tpu.pipeline_mode<synchronous>, transform_indices = @transform_2, window_bounds = array<i64: 2, 1>}, {pipeline_mode = #tpu.pipeline_mode<synchronous>, transform_indices = @transform_3, window_bounds = array<i64: 9, 2, 2>}, {pipeline_mode = #tpu.pipeline_mode<synchronous>, transform_indices = @transform_4, window_bounds = array<i64: 2, 1>}, {pipeline_mode = #tpu.pipeline_mode<synchronous>, transform_indices = @transform_5, window_bounds = array<i64: 8, 2>}, {pipeline_mode = #tpu.pipeline_mode<synchronous>, transform_indices = @transform_6, window_bounds = array<i64: 8, 1>}, {pipeline_mode = #tpu.pipeline_mode<synchronous>, transform_indices = @transform_7, window_bounds = array<i64: 9, 1, 256>}, {transform_indices = @transform_8, window_bounds = array<i64: 1, 8, 256>}]} {
    %c0 = arith.constant 0 : index
    %c0_0 = arith.constant 0 : index
    %c0_1 = arith.constant 0 : index
    %0 = vector.load %arg1[%c0, %c0_0, %c0_1] : memref<1x8x256xf32, #tpu.memory_space<vmem>>, vector<1x8x256xf32>
    %1 = vector.shape_cast %0 : vector<1x8x256xf32> to vector<8x256xf32>
    %c0_2 = arith.constant 0 : index
    %c0_3 = arith.constant 0 : index
    %2 = vector.load %arg2[%c0_2, %c0_3] : memref<2x8xf32, #tpu.memory_space<vmem>>, vector<2x8xf32>
    %cst = arith.constant dense<0.000000e+00> : vector<2x256xf32>
    %3 = tpu.matmul %2, %1, %cst {dimension_numbers = #tpu.dot_dimension_numbers<[1], [0], [0], [1], [0, 0, 1, 1], [], []>} : vector<2x8xf32>, vector<8x256xf32>, vector<2x256xf32> -> vector<2x256xf32>
    %c0_4 = arith.constant 0 : index
    %c0_5 = arith.constant 0 : index
    %4 = vector.load %arg3[%c0_4, %c0_5] : memref<2x1xf32, #tpu.memory_space<vmem>>, vector<2x1xf32>
    %5 = vector.broadcast %4 : vector<2x1xf32> to vector<2x256xf32>
    %6 = arith.addf %3, %5 : vector<2x256xf32>
    %cst_6 = arith.constant 0.000000e+00 : f32
    %7 = vector.broadcast %cst_6 : f32 to vector<2x256xf32>
    %8 = arith.maximumf %6, %7 : vector<2x256xf32>
    %c4 = arith.constant 4 : index
    %c0_7 = arith.constant 0 : index
    %c0_8 = arith.constant 0 : index
    %9 = vector.load %arg4[%c4, %c0_7, %c0_8] : memref<9x2x2xf32, #tpu.memory_space<vmem>>, vector<1x2x2xf32>
    %10 = vector.shape_cast %9 : vector<1x2x2xf32> to vector<2x2xf32>
    %cst_9 = arith.constant dense<0.000000e+00> : vector<2x256xf32>
    %11 = tpu.matmul %10, %8, %cst_9 {dimension_numbers = #tpu.dot_dimension_numbers<[1], [0], [0], [1], [0, 0, 1, 1], [], []>} : vector<2x2xf32>, vector<2x256xf32>, vector<2x256xf32> -> vector<2x256xf32>
    %c17_i32 = arith.constant 17 : i32
    %12 = tpu.dynamic_rotate %8 by %c17_i32 dim 1 : vector<2x256xf32>, i32 -> vector<2x256xf32>
    %c0_10 = arith.constant 0 : index
    %c0_11 = arith.constant 0 : index
    %c0_12 = arith.constant 0 : index
    %13 = vector.load %arg8[%c0_10, %c0_11, %c0_12] : memref<9x1x256xf32, #tpu.memory_space<vmem>>, vector<1x1x256xf32>
    %14 = vector.shape_cast %13 : vector<1x1x256xf32> to vector<1x256xf32>
    %15 = vector.broadcast %14 : vector<1x256xf32> to vector<2x256xf32>
    %16 = arith.mulf %12, %15 : vector<2x256xf32>
    %c0_13 = arith.constant 0 : index
    %c0_14 = arith.constant 0 : index
    %c0_15 = arith.constant 0 : index
    %17 = vector.load %arg4[%c0_13, %c0_14, %c0_15] : memref<9x2x2xf32, #tpu.memory_space<vmem>>, vector<1x2x2xf32>
    %18 = vector.shape_cast %17 : vector<1x2x2xf32> to vector<2x2xf32>
    %cst_16 = arith.constant dense<0.000000e+00> : vector<2x256xf32>
    %19 = tpu.matmul %18, %16, %cst_16 {dimension_numbers = #tpu.dot_dimension_numbers<[1], [0], [0], [1], [0, 0, 1, 1], [], []>} : vector<2x2xf32>, vector<2x256xf32>, vector<2x256xf32> -> vector<2x256xf32>
    %20 = arith.addf %11, %19 : vector<2x256xf32>
    %c16_i32 = arith.constant 16 : i32
    %21 = tpu.dynamic_rotate %8 by %c16_i32 dim 1 : vector<2x256xf32>, i32 -> vector<2x256xf32>
    %c1 = arith.constant 1 : index
    %c0_17 = arith.constant 0 : index
    %c0_18 = arith.constant 0 : index
    %22 = vector.load %arg8[%c1, %c0_17, %c0_18] : memref<9x1x256xf32, #tpu.memory_space<vmem>>, vector<1x1x256xf32>
    %23 = vector.shape_cast %22 : vector<1x1x256xf32> to vector<1x256xf32>
    %24 = vector.broadcast %23 : vector<1x256xf32> to vector<2x256xf32>
    %25 = arith.mulf %21, %24 : vector<2x256xf32>
    %c1_19 = arith.constant 1 : index
    %c0_20 = arith.constant 0 : index
    %c0_21 = arith.constant 0 : index
    %26 = vector.load %arg4[%c1_19, %c0_20, %c0_21] : memref<9x2x2xf32, #tpu.memory_space<vmem>>, vector<1x2x2xf32>
    %27 = vector.shape_cast %26 : vector<1x2x2xf32> to vector<2x2xf32>
    %cst_22 = arith.constant dense<0.000000e+00> : vector<2x256xf32>
    %28 = tpu.matmul %27, %25, %cst_22 {dimension_numbers = #tpu.dot_dimension_numbers<[1], [0], [0], [1], [0, 0, 1, 1], [], []>} : vector<2x2xf32>, vector<2x256xf32>, vector<2x256xf32> -> vector<2x256xf32>
    %29 = arith.addf %20, %28 : vector<2x256xf32>
    %c15_i32 = arith.constant 15 : i32
    %30 = tpu.dynamic_rotate %8 by %c15_i32 dim 1 : vector<2x256xf32>, i32 -> vector<2x256xf32>
    %c2 = arith.constant 2 : index
    %c0_23 = arith.constant 0 : index
    %c0_24 = arith.constant 0 : index
    %31 = vector.load %arg8[%c2, %c0_23, %c0_24] : memref<9x1x256xf32, #tpu.memory_space<vmem>>, vector<1x1x256xf32>
    %32 = vector.shape_cast %31 : vector<1x1x256xf32> to vector<1x256xf32>
    %33 = vector.broadcast %32 : vector<1x256xf32> to vector<2x256xf32>
    %34 = arith.mulf %30, %33 : vector<2x256xf32>
    %c2_25 = arith.constant 2 : index
    %c0_26 = arith.constant 0 : index
    %c0_27 = arith.constant 0 : index
    %35 = vector.load %arg4[%c2_25, %c0_26, %c0_27] : memref<9x2x2xf32, #tpu.memory_space<vmem>>, vector<1x2x2xf32>
    %36 = vector.shape_cast %35 : vector<1x2x2xf32> to vector<2x2xf32>
    %cst_28 = arith.constant dense<0.000000e+00> : vector<2x256xf32>
    %37 = tpu.matmul %36, %34, %cst_28 {dimension_numbers = #tpu.dot_dimension_numbers<[1], [0], [0], [1], [0, 0, 1, 1], [], []>} : vector<2x2xf32>, vector<2x256xf32>, vector<2x256xf32> -> vector<2x256xf32>
    %38 = arith.addf %29, %37 : vector<2x256xf32>
    %c1_i32 = arith.constant 1 : i32
    %39 = tpu.dynamic_rotate %8 by %c1_i32 dim 1 : vector<2x256xf32>, i32 -> vector<2x256xf32>
    %c3 = arith.constant 3 : index
    %c0_29 = arith.constant 0 : index
    %c0_30 = arith.constant 0 : index
    %40 = vector.load %arg8[%c3, %c0_29, %c0_30] : memref<9x1x256xf32, #tpu.memory_space<vmem>>, vector<1x1x256xf32>
    %41 = vector.shape_cast %40 : vector<1x1x256xf32> to vector<1x256xf32>
    %42 = vector.broadcast %41 : vector<1x256xf32> to vector<2x256xf32>
    %43 = arith.mulf %39, %42 : vector<2x256xf32>
    %c3_31 = arith.constant 3 : index
    %c0_32 = arith.constant 0 : index
    %c0_33 = arith.constant 0 : index
    %44 = vector.load %arg4[%c3_31, %c0_32, %c0_33] : memref<9x2x2xf32, #tpu.memory_space<vmem>>, vector<1x2x2xf32>
    %45 = vector.shape_cast %44 : vector<1x2x2xf32> to vector<2x2xf32>
    %cst_34 = arith.constant dense<0.000000e+00> : vector<2x256xf32>
    %46 = tpu.matmul %45, %43, %cst_34 {dimension_numbers = #tpu.dot_dimension_numbers<[1], [0], [0], [1], [0, 0, 1, 1], [], []>} : vector<2x2xf32>, vector<2x256xf32>, vector<2x256xf32> -> vector<2x256xf32>
    %47 = arith.addf %38, %46 : vector<2x256xf32>
    %c255_i32 = arith.constant 255 : i32
    %48 = tpu.dynamic_rotate %8 by %c255_i32 dim 1 : vector<2x256xf32>, i32 -> vector<2x256xf32>
    %c5 = arith.constant 5 : index
    %c0_35 = arith.constant 0 : index
    %c0_36 = arith.constant 0 : index
    %49 = vector.load %arg8[%c5, %c0_35, %c0_36] : memref<9x1x256xf32, #tpu.memory_space<vmem>>, vector<1x1x256xf32>
    %50 = vector.shape_cast %49 : vector<1x1x256xf32> to vector<1x256xf32>
    %51 = vector.broadcast %50 : vector<1x256xf32> to vector<2x256xf32>
    %52 = arith.mulf %48, %51 : vector<2x256xf32>
    %c5_37 = arith.constant 5 : index
    %c0_38 = arith.constant 0 : index
    %c0_39 = arith.constant 0 : index
    %53 = vector.load %arg4[%c5_37, %c0_38, %c0_39] : memref<9x2x2xf32, #tpu.memory_space<vmem>>, vector<1x2x2xf32>
    %54 = vector.shape_cast %53 : vector<1x2x2xf32> to vector<2x2xf32>
    %cst_40 = arith.constant dense<0.000000e+00> : vector<2x256xf32>
    %55 = tpu.matmul %54, %52, %cst_40 {dimension_numbers = #tpu.dot_dimension_numbers<[1], [0], [0], [1], [0, 0, 1, 1], [], []>} : vector<2x2xf32>, vector<2x256xf32>, vector<2x256xf32> -> vector<2x256xf32>
    %56 = arith.addf %47, %55 : vector<2x256xf32>
    %c241_i32 = arith.constant 241 : i32
    %57 = tpu.dynamic_rotate %8 by %c241_i32 dim 1 : vector<2x256xf32>, i32 -> vector<2x256xf32>
    %c6 = arith.constant 6 : index
    %c0_41 = arith.constant 0 : index
    %c0_42 = arith.constant 0 : index
    %58 = vector.load %arg8[%c6, %c0_41, %c0_42] : memref<9x1x256xf32, #tpu.memory_space<vmem>>, vector<1x1x256xf32>
    %59 = vector.shape_cast %58 : vector<1x1x256xf32> to vector<1x256xf32>
    %60 = vector.broadcast %59 : vector<1x256xf32> to vector<2x256xf32>
    %61 = arith.mulf %57, %60 : vector<2x256xf32>
    %c6_43 = arith.constant 6 : index
    %c0_44 = arith.constant 0 : index
    %c0_45 = arith.constant 0 : index
    %62 = vector.load %arg4[%c6_43, %c0_44, %c0_45] : memref<9x2x2xf32, #tpu.memory_space<vmem>>, vector<1x2x2xf32>
    %63 = vector.shape_cast %62 : vector<1x2x2xf32> to vector<2x2xf32>
    %cst_46 = arith.constant dense<0.000000e+00> : vector<2x256xf32>
    %64 = tpu.matmul %63, %61, %cst_46 {dimension_numbers = #tpu.dot_dimension_numbers<[1], [0], [0], [1], [0, 0, 1, 1], [], []>} : vector<2x2xf32>, vector<2x256xf32>, vector<2x256xf32> -> vector<2x256xf32>
    %65 = arith.addf %56, %64 : vector<2x256xf32>
    %c240_i32 = arith.constant 240 : i32
    %66 = tpu.dynamic_rotate %8 by %c240_i32 dim 1 : vector<2x256xf32>, i32 -> vector<2x256xf32>
    %c7 = arith.constant 7 : index
    %c0_47 = arith.constant 0 : index
    %c0_48 = arith.constant 0 : index
    %67 = vector.load %arg8[%c7, %c0_47, %c0_48] : memref<9x1x256xf32, #tpu.memory_space<vmem>>, vector<1x1x256xf32>
    %68 = vector.shape_cast %67 : vector<1x1x256xf32> to vector<1x256xf32>
    %69 = vector.broadcast %68 : vector<1x256xf32> to vector<2x256xf32>
    %70 = arith.mulf %66, %69 : vector<2x256xf32>
    %c7_49 = arith.constant 7 : index
    %c0_50 = arith.constant 0 : index
    %c0_51 = arith.constant 0 : index
    %71 = vector.load %arg4[%c7_49, %c0_50, %c0_51] : memref<9x2x2xf32, #tpu.memory_space<vmem>>, vector<1x2x2xf32>
    %72 = vector.shape_cast %71 : vector<1x2x2xf32> to vector<2x2xf32>
    %cst_52 = arith.constant dense<0.000000e+00> : vector<2x256xf32>
    %73 = tpu.matmul %72, %70, %cst_52 {dimension_numbers = #tpu.dot_dimension_numbers<[1], [0], [0], [1], [0, 0, 1, 1], [], []>} : vector<2x2xf32>, vector<2x256xf32>, vector<2x256xf32> -> vector<2x256xf32>
    %74 = arith.addf %65, %73 : vector<2x256xf32>
    %c239_i32 = arith.constant 239 : i32
    %75 = tpu.dynamic_rotate %8 by %c239_i32 dim 1 : vector<2x256xf32>, i32 -> vector<2x256xf32>
    %c8 = arith.constant 8 : index
    %c0_53 = arith.constant 0 : index
    %c0_54 = arith.constant 0 : index
    %76 = vector.load %arg8[%c8, %c0_53, %c0_54] : memref<9x1x256xf32, #tpu.memory_space<vmem>>, vector<1x1x256xf32>
    %77 = vector.shape_cast %76 : vector<1x1x256xf32> to vector<1x256xf32>
    %78 = vector.broadcast %77 : vector<1x256xf32> to vector<2x256xf32>
    %79 = arith.mulf %75, %78 : vector<2x256xf32>
    %c8_55 = arith.constant 8 : index
    %c0_56 = arith.constant 0 : index
    %c0_57 = arith.constant 0 : index
    %80 = vector.load %arg4[%c8_55, %c0_56, %c0_57] : memref<9x2x2xf32, #tpu.memory_space<vmem>>, vector<1x2x2xf32>
    %81 = vector.shape_cast %80 : vector<1x2x2xf32> to vector<2x2xf32>
    %cst_58 = arith.constant dense<0.000000e+00> : vector<2x256xf32>
    %82 = tpu.matmul %81, %79, %cst_58 {dimension_numbers = #tpu.dot_dimension_numbers<[1], [0], [0], [1], [0, 0, 1, 1], [], []>} : vector<2x2xf32>, vector<2x256xf32>, vector<2x256xf32> -> vector<2x256xf32>
    %83 = arith.addf %74, %82 : vector<2x256xf32>
    %c0_59 = arith.constant 0 : index
    %c0_60 = arith.constant 0 : index
    %84 = vector.load %arg5[%c0_59, %c0_60] : memref<2x1xf32, #tpu.memory_space<vmem>>, vector<2x1xf32>
    %85 = vector.broadcast %84 : vector<2x1xf32> to vector<2x256xf32>
    %86 = arith.addf %83, %85 : vector<2x256xf32>
    %cst_61 = arith.constant 0.000000e+00 : f32
    %87 = vector.broadcast %cst_61 : f32 to vector<2x256xf32>
    %88 = arith.maximumf %86, %87 : vector<2x256xf32>
    %c0_62 = arith.constant 0 : index
    %c0_63 = arith.constant 0 : index
    %89 = vector.load %arg6[%c0_62, %c0_63] : memref<8x2xf32, #tpu.memory_space<vmem>>, vector<8x2xf32>
    %cst_64 = arith.constant dense<0.000000e+00> : vector<8x256xf32>
    %90 = tpu.matmul %89, %88, %cst_64 {dimension_numbers = #tpu.dot_dimension_numbers<[1], [0], [0], [1], [0, 0, 1, 1], [], []>} : vector<8x2xf32>, vector<2x256xf32>, vector<8x256xf32> -> vector<8x256xf32>
    %c0_65 = arith.constant 0 : index
    %c0_66 = arith.constant 0 : index
    %91 = vector.load %arg7[%c0_65, %c0_66] : memref<8x1xf32, #tpu.memory_space<vmem>>, vector<8x1xf32>
    %92 = vector.broadcast %91 : vector<8x1xf32> to vector<8x256xf32>
    %93 = arith.addf %90, %92 : vector<8x256xf32>
    %94 = arith.addf %93, %1 : vector<8x256xf32>
    %cst_67 = arith.constant 0.000000e+00 : f32
    %95 = vector.broadcast %cst_67 : f32 to vector<8x256xf32>
    %96 = arith.maximumf %94, %95 : vector<8x256xf32>
    %c0_68 = arith.constant 0 : index
    %c0_69 = arith.constant 0 : index
    %c0_70 = arith.constant 0 : index
    %97 = vector.load %arg9[%c0_68, %c0_69, %c0_70] : memref<1x8x256xf32, #tpu.memory_space<vmem>>, vector<1x8x256xf32>
    %98 = vector.shape_cast %97 : vector<1x8x256xf32> to vector<8x256xf32>
    %99 = vector.shape_cast %96 : vector<8x256xf32> to vector<1x8x256xf32>
    tpu.vector_store %arg9[%c0_68, %c0_69, %c0_70], %99 {strides = array<i32>} : memref<1x8x256xf32, #tpu.memory_space<vmem>>, vector<1x8x256xf32>,
    return
  }
  func.func @transform_0(%arg0: i32) -> (i32, i32, i32) {
    %c0_i32 = arith.constant 0 : i32
    %c0_i32_0 = arith.constant 0 : i32
    %c0_i32_1 = arith.constant 0 : i32
    return %arg0, %c0_i32, %c0_i32_0 : i32, i32, i32
  }
  func.func @transform_1(%arg0: i32) -> (i32, i32) {
    %c0_i32 = arith.constant 0 : i32
    %c0_i32_0 = arith.constant 0 : i32
    %c0_i32_1 = arith.constant 0 : i32
    return %c0_i32, %c0_i32_0 : i32, i32
  }
  func.func @transform_2(%arg0: i32) -> (i32, i32) {
    %c0_i32 = arith.constant 0 : i32
    %c0_i32_0 = arith.constant 0 : i32
    %c0_i32_1 = arith.constant 0 : i32
    return %c0_i32, %c0_i32_0 : i32, i32
  }
  func.func @transform_3(%arg0: i32) -> (i32, i32, i32) {
    %c0_i32 = arith.constant 0 : i32
    %c0_i32_0 = arith.constant 0 : i32
    %c0_i32_1 = arith.constant 0 : i32
    %c0_i32_2 = arith.constant 0 : i32
    return %c0_i32, %c0_i32_0, %c0_i32_1 : i32, i32, i32
  }
  func.func @transform_4(%arg0: i32) -> (i32, i32) {
    %c0_i32 = arith.constant 0 : i32
    %c0_i32_0 = arith.constant 0 : i32
    %c0_i32_1 = arith.constant 0 : i32
    return %c0_i32, %c0_i32_0 : i32, i32
  }
  func.func @transform_5(%arg0: i32) -> (i32, i32) {
    %c0_i32 = arith.constant 0 : i32
    %c0_i32_0 = arith.constant 0 : i32
    %c0_i32_1 = arith.constant 0 : i32
    return %c0_i32, %c0_i32_0 : i32, i32
  }
  func.func @transform_6(%arg0: i32) -> (i32, i32) {
    %c0_i32 = arith.constant 0 : i32
    %c0_i32_0 = arith.constant 0 : i32
    %c0_i32_1 = arith.constant 0 : i32
    return %c0_i32, %c0_i32_0 : i32, i32
  }
  func.func @transform_7(%arg0: i32) -> (i32, i32, i32) {
    %c0_i32 = arith.constant 0 : i32
    %c0_i32_0 = arith.constant 0 : i32
    %c0_i32_1 = arith.constant 0 : i32
    %c0_i32_2 = arith.constant 0 : i32
    return %c0_i32, %c0_i32_0, %c0_i32_1 : i32, i32, i32
  }
  func.func @transform_8(%arg0: i32) -> (i32, i32, i32) {
    %c0_i32 = arith.constant 0 : i32
    %c0_i32_0 = arith.constant 0 : i32
    %c0_i32_1 = arith.constant 0 : i32
    return %arg0, %c0_i32, %c0_i32_0 : i32, i32, i32
  }
}

</mosaic_0001>

<llo_original>
// kernel: btnk2_forward.1
$region0: #{btnk2_forward.1}
  #allocation0 [shape = 'u32[]', space=smem, size = 0x4, offset = 0x4, fixed_abs, tag = 'smem constant byte address 0x4 - core index']
  #allocation1 [shape = 'u32[72,128]{1,0:T(1,128)}', space=vmem, size = 0x9000, scoped, tag = 'internal scratch']
  %s0 = inlined_call_operand.vmem [shape: f32[2,8,256], index: 0, kind: input, shape index: {}]
  %s1 = inlined_call_operand.vmem [shape: f32[2,8], index: 1, kind: input, shape index: {}]
  %s2 = inlined_call_operand.vmem [shape: f32[2,1], index: 2, kind: input, shape index: {}]
  %s3 = inlined_call_operand.vmem [shape: f32[9,2,2], index: 3, kind: input, shape index: {}]
  %s4 = inlined_call_operand.vmem [shape: f32[2,1], index: 4, kind: input, shape index: {}]
  %s5 = inlined_call_operand.vmem [shape: f32[8,2], index: 5, kind: input, shape index: {}]
  %s6 = inlined_call_operand.vmem [shape: f32[8,1], index: 6, kind: input, shape index: {}]
  %s7 = inlined_call_operand.vmem [shape: f32[9,1,256], index: 7, kind: input, shape index: {}]
  %s8 = inlined_call_operand.vmem [shape: f32[2,8,256], index: 8, kind: output, shape index: {}]
  %s9 = sld [smem:[#allocation0]]
  $region65: #{btnk2_forward.1} parent=0
    _
  %s11 = ssub.s32 1, %s9
  %s12 = scalar_select 0, %s11, %s9
  loop: start=0, step=1, limit=4
  $region2: #{btnk2_forward.1} parent=0 // loop_pre_header
    _
  $region3: #{btnk2_forward.1} parent=0 // loop_header
    %s14 = sphi 0, %s18
    %p15 = scmp.ge.s32.totalorder %s14, 4
    %s24 = sphi 0, %s26
    %s27 = sphi 0, %s24
    %s28 = sphi 0, %s27
    %s44 = sphi 0, %s28
    %s48 = sphi 0, %s48
    %s50 = sphi 0, %s48
    %s51 = sphi 0, %s50
    %s65 = sphi 0, %s51
    %s69 = sphi 0, %s69
    %s71 = sphi 0, %s69
    %s72 = sphi 0, %s71
    %s86 = sphi 0, %s72
    %s90 = sphi 0, %s90
    %s92 = sphi 0, %s90
    %s93 = sphi 0, %s92
    %s107 = sphi 0, %s93
    %s111 = sphi 0, %s111
    %s113 = sphi 0, %s111
    %s114 = sphi 0, %s113
    %s128 = sphi 0, %s114
    %s132 = sphi 0, %s132
    %s134 = sphi 0, %s132
    %s135 = sphi 0, %s134
    %s149 = sphi 0, %s135
    %s153 = sphi 0, %s153
    %s155 = sphi 0, %s153
    %s156 = sphi 0, %s155
    %s170 = sphi 0, %s156
    %s174 = sphi 0, %s174
    %s176 = sphi 0, %s174
    %s177 = sphi 0, %s176
    %s191 = sphi 0, %s177
    %s197 = sphi 0, %s199
    %s200 = sphi 0, %s197
    %s201 = sphi 0, %s200
    %s217 = sphi 0, %s201
  $region4: #{btnk2_forward.1} parent=0 // loop_header_branch
    %17 = sbr.rel (%p15) target = $region8
  $region5: #{btnk2_forward.1} parent=0 // loop_body
    %s19 = ssub.s32 %s14, 1
    %s20 = ssub.s32 %s14, 2
    %s21 = sadd.s32 %s14, 1
    %s22 = ssub.s32 %s14, %s21
    %p23 = scmp.eq.s32.totalorder %s22, 0
    %s25 = sadd.s32 %s24, 1
    %s26 = scalar_select %p23, %s24, %s25
    %p29 = pneg %p23
    %p30 = scmp.eq.s32.totalorder %s14, 1
    %p31 = por %p29, %p30
    %p32 = scmp.ne.s32.totalorder %s24, %s27
    %p33 = scmp.eq.s32.totalorder %s14, 0
    %p34 = por %p32, %p33
    %p35 = scmp.ne.s32.totalorder %s24, %s27
    %p36 = scmp.eq.s32.totalorder %s19, 1
    %p37 = por %p35, %p36
    %p38 = scmp.ne.s32.totalorder %s27, %s28
    %p39 = scmp.eq.s32.totalorder %s19, 0
    %p40 = por %p38, %p39
    %p41 = scmp.ne.s32.totalorder %s27, %s28
    %p42 = scmp.eq.s32.totalorder %s20, 1
    %p43 = por %p41, %p42
    %p45 = scmp.ne.s32.totalorder %s28, %s44
    %p46 = scmp.eq.s32.totalorder %s20, 0
    %p47 = por %p45, %p46
    %s49 = sadd.s32 %s48, 1
    %p52 = scmp.eq.s32.totalorder %s14, 1
    %p53 = scmp.ne.s32.totalorder %s48, %s50
    %p54 = scmp.eq.s32.totalorder %s14, 0
    %p55 = por %p53, %p54
    %p56 = scmp.ne.s32.totalorder %s48, %s50
    %p57 = scmp.eq.s32.totalorder %s19, 1
    %p58 = por %p56, %p57
    %p59 = scmp.ne.s32.totalorder %s50, %s51
    %p60 = scmp.eq.s32.totalorder %s19, 0
    %p61 = por %p59, %p60
    %p62 = scmp.ne.s32.totalorder %s50, %s51
    %p63 = scmp.eq.s32.totalorder %s20, 1
    %p64 = por %p62, %p63
    %p66 = scmp.ne.s32.totalorder %s51, %s65
    %p67 = scmp.eq.s32.totalorder %s20, 0
    %p68 = por %p66, %p67
    %s70 = sadd.s32 %s69, 1
    %p73 = scmp.eq.s32.totalorder %s14, 1
    %p74 = scmp.ne.s32.totalorder %s69, %s71
    %p75 = scmp.eq.s32.totalorder %s14, 0
    %p76 = por %p74, %p75
    %p77 = scmp.ne.s32.totalorder %s69, %s71
    %p78 = scmp.eq.s32.totalorder %s19, 1
    %p79 = por %p77, %p78
    %p80 = scmp.ne.s32.totalorder %s71, %s72
    %p81 = scmp.eq.s32.totalorder %s19, 0
    %p82 = por %p80, %p81
    %p83 = scmp.ne.s32.totalorder %s71, %s72
    %p84 = scmp.eq.s32.totalorder %s20, 1
    %p85 = por %p83, %p84
    %p87 = scmp.ne.s32.totalorder %s72, %s86
    %p88 = scmp.eq.s32.totalorder %s20, 0
    %p89 = por %p87, %p88
    %s91 = sadd.s32 %s90, 1
    %p94 = scmp.eq.s32.totalorder %s14, 1
    %p95 = scmp.ne.s32.totalorder %s90, %s92
    %p96 = scmp.eq.s32.totalorder %s14, 0
    %p97 = por %p95, %p96
    %p98 = scmp.ne.s32.totalorder %s90, %s92
    %p99 = scmp.eq.s32.totalorder %s19, 1
    %p100 = por %p98, %p99
    %p101 = scmp.ne.s32.totalorder %s92, %s93
    %p102 = scmp.eq.s32.totalorder %s19, 0
    %p103 = por %p101, %p102
    %p104 = scmp.ne.s32.totalorder %s92, %s93
    %p105 = scmp.eq.s32.totalorder %s20, 1
    %p106 = por %p104, %p105
    %p108 = scmp.ne.s32.totalorder %s93, %s107
    %p109 = scmp.eq.s32.totalorder %s20, 0
    %p110 = por %p108, %p109
    %s112 = sadd.s32 %s111, 1
    %p115 = scmp.eq.s32.totalorder %s14, 1
    %p116 = scmp.ne.s32.totalorder %s111, %s113
    %p117 = scmp.eq.s32.totalorder %s14, 0
    %p118 = por %p116, %p117
    %p119 = scmp.ne.s32.totalorder %s111, %s113
    %p120 = scmp.eq.s32.totalorder %s19, 1
    %p121 = por %p119, %p120
    %p122 = scmp.ne.s32.totalorder %s113, %s114
    %p123 = scmp.eq.s32.totalorder %s19, 0
    %p124 = por %p122, %p123
    %p125 = scmp.ne.s32.totalorder %s113, %s114
    %p126 = scmp.eq.s32.totalorder %s20, 1
    %p127 = por %p125, %p126
    %p129 = scmp.ne.s32.totalorder %s114, %s128
    %p130 = scmp.eq.s32.totalorder %s20, 0
    %p131 = por %p129, %p130
    %s133 = sadd.s32 %s132, 1
    %p136 = scmp.eq.s32.totalorder %s14, 1
    %p137 = scmp.ne.s32.totalorder %s132, %s134
    %p138 = scmp.eq.s32.totalorder %s14, 0
    %p139 = por %p137, %p138
    %p140 = scmp.ne.s32.totalorder %s132, %s134
    %p141 = scmp.eq.s32.totalorder %s19, 1
    %p142 = por %p140, %p141
    %p143 = scmp.ne.s32.totalorder %s134, %s135
    %p144 = scmp.eq.s32.totalorder %s19, 0
    %p145 = por %p143, %p144
    %p146 = scmp.ne.s32.totalorder %s134, %s135
    %p147 = scmp.eq.s32.totalorder %s20, 1
    %p148 = por %p146, %p147
    %p150 = scmp.ne.s32.totalorder %s135, %s149
    %p151 = scmp.eq.s32.totalorder %s20, 0
    %p152 = por %p150, %p151
    %s154 = sadd.s32 %s153, 1
    %p157 = scmp.eq.s32.totalorder %s14, 1
    %p158 = scmp.ne.s32.totalorder %s153, %s155
    %p159 = scmp.eq.s32.totalorder %s14, 0
    %p160 = por %p158, %p159
    %p161 = scmp.ne.s32.totalorder %s153, %s155
    %p162 = scmp.eq.s32.totalorder %s19, 1
    %p163 = por %p161, %p162
    %p164 = scmp.ne.s32.totalorder %s155, %s156
    %p165 = scmp.eq.s32.totalorder %s19, 0
    %p166 = por %p164, %p165
    %p167 = scmp.ne.s32.totalorder %s155, %s156
    %p168 = scmp.eq.s32.totalorder %s20, 1
    %p169 = por %p167, %p168
    %p171 = scmp.ne.s32.totalorder %s156, %s170
    %p172 = scmp.eq.s32.totalorder %s20, 0
    %p173 = por %p171, %p172
    %s175 = sadd.s32 %s174, 1
    %p178 = scmp.eq.s32.totalorder %s14, 1
    %p179 = scmp.ne.s32.totalorder %s174, %s176
    %p180 = scmp.eq.s32.totalorder %s14, 0
    %p181 = por %p179, %p180
    %p182 = scmp.ne.s32.totalorder %s174, %s176
    %p183 = scmp.eq.s32.totalorder %s19, 1
    %p184 = por %p182, %p183
    %p185 = scmp.ne.s32.totalorder %s176, %s177
    %p186 = scmp.eq.s32.totalorder %s19, 0
    %p187 = por %p185, %p186
    %p188 = scmp.ne.s32.totalorder %s176, %s177
    %p189 = scmp.eq.s32.totalorder %s20, 1
    %p190 = por %p188, %p189
    %p192 = scmp.ne.s32.totalorder %s177, %s191
    %p193 = scmp.eq.s32.totalorder %s20, 0
    %p194 = por %p192, %p193
    %s195 = ssub.s32 %s14, %s21
    %p196 = scmp.eq.s32.totalorder %s195, 0
    %s198 = sadd.s32 %s197, 1
    %s199 = scalar_select %p196, %s197, %s198
    %p202 = pneg %p196
    %p203 = scmp.eq.s32.totalorder %s14, 1
    %p204 = por %p202, %p203
    %p205 = scmp.ne.s32.totalorder %s197, %s200
    %p206 = scmp.eq.s32.totalorder %s14, 0
    %p207 = por %p205, %p206
    %p208 = scmp.ne.s32.totalorder %s197, %s200
    %p209 = scmp.eq.s32.totalorder %s19, 1
    %p210 = por %p208, %p209
    %p211 = scmp.ne.s32.totalorder %s200, %s201
    %p212 = scmp.eq.s32.totalorder %s19, 0
    %p213 = por %p211, %p212
    %p214 = scmp.ne.s32.totalorder %s200, %s201
    %p215 = scmp.eq.s32.totalorder %s20, 1
    %p216 = por %p214, %p215
    %p218 = scmp.ne.s32.totalorder %s201, %s217
    %p219 = scmp.eq.s32.totalorder %s20, 0
    %p220 = por %p218, %p219
    %p221 = scmp.le.s32.totalorder 1, %s14
    %p222 = scmp.lt.s32.totalorder %s14, 3
    %p223 = pnand %p221, %p222
    %p224 = pneg %p223
    // Predicated region
    $region9: #{btnk2_forward.1} parent=5 // pred_check
      _
    $region10: #{btnk2_forward.1} parent=5 // pred_check_branch
      %226 = sbr.rel (%p223) target = $region12
    $region11: #{btnk2_forward.1} parent=5 // pred_region
      %s227 = ssub.s32 %s14, 1
      // Predicated region
      $region13: #{btnk2_forward.1} parent=11 // pred_check
        %p228 = pneg %p61
      $region14: #{btnk2_forward.1} parent=11 // pred_check_branch
        %230 = sbr.rel (%p228) target = $region16
      $region15: #{btnk2_forward.1} parent=11 // pred_region
        _
      $region16: #{btnk2_forward.1} parent=11 // pred_fallthru
        _
      // Predicated region
      $region17: #{btnk2_forward.1} parent=11 // pred_check
        %p231 = pneg %p82
      $region18: #{btnk2_forward.1} parent=11 // pred_check_branch
        %233 = sbr.rel (%p231) target = $region20
      $region19: #{btnk2_forward.1} parent=11 // pred_region
        _
      $region20: #{btnk2_forward.1} parent=11 // pred_fallthru
        _
      // Predicated region
      $region21: #{btnk2_forward.1} parent=11 // pred_check
        %p234 = pneg %p103
      $region22: #{btnk2_forward.1} parent=11 // pred_check_branch
        %236 = sbr.rel (%p234) target = $region24
      $region23: #{btnk2_forward.1} parent=11 // pred_region
        _
      $region24: #{btnk2_forward.1} parent=11 // pred_fallthru
        _
      // Predicated region
      $region25: #{btnk2_forward.1} parent=11 // pred_check
        %p237 = pneg %p124
      $region26: #{btnk2_forward.1} parent=11 // pred_check_branch
        %239 = sbr.rel (%p237) target = $region28
      $region27: #{btnk2_forward.1} parent=11 // pred_region
        _
      $region28: #{btnk2_forward.1} parent=11 // pred_fallthru
        _
      // Predicated region
      $region29: #{btnk2_forward.1} parent=11 // pred_check
        %p240 = pneg %p145
      $region30: #{btnk2_forward.1} parent=11 // pred_check_branch
        %242 = sbr.rel (%p240) target = $region32
      $region31: #{btnk2_forward.1} parent=11 // pred_region
        _
      $region32: #{btnk2_forward.1} parent=11 // pred_fallthru
        _
      // Predicated region
      $region33: #{btnk2_forward.1} parent=11 // pred_check
        %p243 = pneg %p166
      $region34: #{btnk2_forward.1} parent=11 // pred_check_branch
        %245 = sbr.rel (%p243) target = $region36
      $region35: #{btnk2_forward.1} parent=11 // pred_region
        _
      $region36: #{btnk2_forward.1} parent=11 // pred_fallthru
        _
      // Predicated region
      $region37: #{btnk2_forward.1} parent=11 // pred_check
        %p246 = pneg %p187
      $region38: #{btnk2_forward.1} parent=11 // pred_check_branch
        %248 = sbr.rel (%p246) target = $region40
      $region39: #{btnk2_forward.1} parent=11 // pred_region
        _
      $region40: #{btnk2_forward.1} parent=11 // pred_fallthru
        _
    $region12: #{btnk2_forward.1} parent=5 // pred_fallthru
      _
    %p249 = scmp.lt.s32.totalorder %s14, 2
    // Predicated region
    $region41: #{btnk2_forward.1} parent=5 // pred_check
      %p250 = pneg %p249
    $region42: #{btnk2_forward.1} parent=5 // pred_check_branch
      %252 = sbr.rel (%p250) target = $region44
    $region43: #{btnk2_forward.1} parent=5 // pred_region
      // Predicated region
      $region45: #{btnk2_forward.1} parent=43 // pred_check
        %p253 = pneg %p34
      $region46: #{btnk2_forward.1} parent=43 // pred_check_branch
        %255 = sbr.rel (%p253) target = $region48
      $region47: #{btnk2_forward.1} parent=43 // pred_region
        %p256 = scmp.lt.s32.totalorder %s14, 1
        %s257 = scalar_select %p256, %s14, 1
        %s258 = smul.addr %s257, 2
        %s259 = smul.addr %s258, 8
        %s260 = scalar_lea.vmem %s0, %s259
      $region48: #{btnk2_forward.1} parent=43 // pred_fallthru
        _
    $region44: #{btnk2_forward.1} parent=5 // pred_fallthru
      _
    %p261 = scmp.le.s32.totalorder 1, %s14
    %p262 = scmp.lt.s32.totalorder %s14, 3
    %p263 = pnand %p261, %p262
    %p264 = pneg %p263
    // Predicated region
    $region49: #{btnk2_forward.1} parent=5 // pred_check
      _
    $region50: #{btnk2_forward.1} parent=5 // pred_check_branch
      %266 = sbr.rel (%p263) target = $region52
    $region51: #{btnk2_forward.1} parent=5 // pred_region
      %s267 = ssub.s32 %s14, 1
      %p268 = scmp.lt.s32.totalorder %s19, 1
      %s269 = scalar_select %p268, %s19, 1
      %s270 = smul.addr %s269, 2
      %s271 = smul.addr %s270, 8
      %s272 = scalar_lea.vmem %s0, %s271
      %p273 = pneg %p40
      %p274 = pneg %p37
      %p275 = pneg %p61
      %p276 = pneg %p58
      %p277 = pneg %p82
      %p278 = pneg %p79
      %p279 = pneg %p103
      %p280 = pneg %p100
      %p281 = pneg %p124
      %p282 = pneg %p121
      %p283 = pneg %p145
      %p284 = pneg %p142
      %p285 = pneg %p166
      %p286 = pneg %p163
      %p287 = pneg %p187
      %p288 = pneg %p184
      %p289 = pneg %p213
      %p290 = pneg %p210
      %p291 = scmp.lt.s32.totalorder %s19, 1
      %s292 = scalar_select %p291, %s19, 1
      %s293 = smul.addr %s292, 2
      %s294 = smul.addr %s293, 8
      %s295 = scalar_lea.vmem %s8, %s294
      %p296 = scmp.lt.s32.totalorder %s19, 1
      %s297 = scalar_select %p296, %s19, 1
      %s298 = smul.addr %s297, 2
      %s299 = smul.addr %s298, 8
      %s300 = scalar_lea.vmem %s0, %s299
      %p301 = scmp.lt.s32.totalorder %s19, 1
      %s302 = scalar_select %p301, %s19, 1
      %s303 = smul.addr %s302, 2
      %s304 = smul.addr %s303, 8
      %s305 = scalar_lea.vmem %s8, %s304
      %v306 = vld [vmem:[%s300] sm:$0xff]
      %v307 = vld [vmem:[%s300 + $0x8] sm:$0xff]
      %v308 = vld [vmem:[%s1] sm:$0x3]
      %v309 = vld [vmem:[%s2] sm:$0x3]
      %311 = vset.pattern.permute.xlu0 0
      %312 = vperm.xlu0 %311, %v309
      %v313 = vpop.permute.xlu0 %312
      %vm315 = vcmask 64512
      %v317 = vsel %vm315, %v308, 0
      %319 = vmatpush.msra.mxu0 0.0
      %320 = vmatpush.msra.mxu0 0.0
      %321 = vmatpush.msra.mxu0 0.0
      %322 = vmatpush.msra.mxu0 0.0
      %323 = vmatpush.msra.mxu0 0.0
      %324 = vmatpush.msra.mxu0 0.0
      %325 = vmatpush.msra.mxu0 0.0
      %326 = vmatpush.msra.mxu0 0.0
      %327 = vmatpush.msra.mxu0 0.0
      %328 = vmatpush.msra.mxu0 0.0
      %329 = vmatpush.msra.mxu0 0.0
      %330 = vmatpush.msra.mxu0 0.0
      %331 = vmatpush.msra.mxu0 0.0
      %332 = vmatpush.msra.mxu0 0.0
      %333 = vmatpush.msra.mxu0 0.0
      %334 = vmatpush.msra.mxu0 %v306
      %335 = vmatmul.f32.gmra.mxu0 %v317
      %v336 = vpop.f32.mrf.mxu0
      %v337 = vadd.f32 %v313, %v336
      %338 = vdwg.mxu0
      %339 = vmatpush.msra.mxu0 0.0
      %340 = vmatpush.msra.mxu0 0.0
      %341 = vmatpush.msra.mxu0 0.0
      %342 = vmatpush.msra.mxu0 0.0
      %343 = vmatpush.msra.mxu0 0.0
      %344 = vmatpush.msra.mxu0 0.0
      %345 = vmatpush.msra.mxu0 0.0
      %346 = vmatpush.msra.mxu0 0.0
      %347 = vmatpush.msra.mxu0 0.0
      %348 = vmatpush.msra.mxu0 0.0
      %349 = vmatpush.msra.mxu0 0.0
      %350 = vmatpush.msra.mxu0 0.0
      %351 = vmatpush.msra.mxu0 0.0
      %352 = vmatpush.msra.mxu0 0.0
      %353 = vmatpush.msra.mxu0 0.0
      %354 = vmatpush.msra.mxu0 %v307
      %355 = vmatmul.f32.gmra.mxu0 %v317
      %v356 = vpop.f32.mrf.mxu0
      %v357 = vadd.f32 %v313, %v356
      %358 = vdwg.mxu0
      %v359 = vmax.f32 %v337, 0.0
      %v360 = vmax.f32 %v357, 0.0
      %s361 = scalar_lea.vmem %s3, 8
      %v362 = vld [vmem:[%s361] sm:$0x3]
      %363 = vrot.lane.b32.xlu0 %v359, 17
      %v364 = vpop.permute.xlu0 %363
      %365 = vrot.lane.b32.xlu0 %v360, 17
      %v366 = vpop.permute.xlu0 %365
      %v367 = vlaneseq
      %v368 = vand.u32 %v367, 127
      %vm369 = vcmp.lt.s32.totalorder %v368, 17
      %v370 = vsel %vm369, %v364, %v366
      %v371 = vsel %vm369, %v366, %v364
      %v372 = vld [vmem:[%s7] sm:$0x3]
      %v374 = vperm.slane %v372, 0
      %v375 = vperm.slane %v372, 1
      %v378 = vmul.f32 %v371, %v374
      %v379 = vmul.f32 %v370, %v375
      %v380 = vld [vmem:[%s3] sm:$0x3]
      %vm381 = vcmask 15360
      %v383 = vsel %vm381, %v380, 0
      %vm385 = vcmask 1041408
      %v387 = vsel %vm385, %v378, 0
      %v390 = vsel %vm385, %v379, 0
      %392 = vmatpush.msra.mxu0 0.0
      %393 = vmatpush.msra.mxu0 0.0
      %394 = vmatpush.msra.mxu0 0.0
      %395 = vmatpush.msra.mxu0 0.0
      %396 = vmatpush.msra.mxu0 0.0
      %397 = vmatpush.msra.mxu0 0.0
      %398 = vmatpush.msra.mxu0 0.0
      %399 = vmatpush.msra.mxu0 0.0
      %400 = vmatpush.msra.mxu0 0.0
      %401 = vmatpush.msra.mxu0 0.0
      %402 = vmatpush.msra.mxu0 0.0
      %403 = vmatpush.msra.mxu0 0.0
      %404 = vmatpush.msra.mxu0 0.0
      %405 = vmatpush.msra.mxu0 0.0
      %406 = vmatpush.msra.mxu0 0.0
      %407 = vmatpush.msra.mxu0 %v387
      %408 = vmatmul.f32.gmra.mxu0 %v383
      %v409 = vpop.f32.mrf.mxu0
      %v410 = vadd.f32 0.0, %v409
      %411 = vdwg.mxu0
      %412 = vmatpush.msra.mxu0 0.0
      %413 = vmatpush.msra.mxu0 0.0
      %414 = vmatpush.msra.mxu0 0.0
      %415 = vmatpush.msra.mxu0 0.0
      %416 = vmatpush.msra.mxu0 0.0
      %417 = vmatpush.msra.mxu0 0.0
      %418 = vmatpush.msra.mxu0 0.0
      %419 = vmatpush.msra.mxu0 0.0
      %420 = vmatpush.msra.mxu0 0.0
      %421 = vmatpush.msra.mxu0 0.0
      %422 = vmatpush.msra.mxu0 0.0
      %423 = vmatpush.msra.mxu0 0.0
      %424 = vmatpush.msra.mxu0 0.0
      %425 = vmatpush.msra.mxu0 0.0
      %426 = vmatpush.msra.mxu0 0.0
      %427 = vmatpush.msra.mxu0 %v390
      %428 = vmatmul.f32.gmra.mxu0 %v383
      %v429 = vpop.f32.mrf.mxu0
      %v430 = vadd.f32 0.0, %v429
      %431 = vdwg.mxu0
      %v433 = vsel %vm381, %v362, 0
      %v436 = vsel %vm385, %v359, 0
      %v439 = vsel %vm385, %v360, 0
      %441 = vmatpush.msra.mxu0 0.0
      %442 = vmatpush.msra.mxu0 0.0
      %443 = vmatpush.msra.mxu0 0.0
      %444 = vmatpush.msra.mxu0 0.0
      %445 = vmatpush.msra.mxu0 0.0
      %446 = vmatpush.msra.mxu0 0.0
      %447 = vmatpush.msra.mxu0 0.0
      %448 = vmatpush.msra.mxu0 0.0
      %449 = vmatpush.msra.mxu0 0.0
      %450 = vmatpush.msra.mxu0 0.0
      %451 = vmatpush.msra.mxu0 0.0
      %452 = vmatpush.msra.mxu0 0.0
      %453 = vmatpush.msra.mxu0 0.0
      %454 = vmatpush.msra.mxu0 0.0
      %455 = vmatpush.msra.mxu0 0.0
      %456 = vmatpush.msra.mxu0 %v436
      %457 = vmatmul.f32.gmra.mxu0 %v433
      %v458 = vpop.f32.mrf.mxu0
      %v459 = vadd.f32 %v410, %v458
      %460 = vdwg.mxu0
      %461 = vmatpush.msra.mxu0 0.0
      %462 = vmatpush.msra.mxu0 0.0
      %463 = vmatpush.msra.mxu0 0.0
      %464 = vmatpush.msra.mxu0 0.0
      %465 = vmatpush.msra.mxu0 0.0
      %466 = vmatpush.msra.mxu0 0.0
      %467 = vmatpush.msra.mxu0 0.0
      %468 = vmatpush.msra.mxu0 0.0
      %469 = vmatpush.msra.mxu0 0.0
      %470 = vmatpush.msra.mxu0 0.0
      %471 = vmatpush.msra.mxu0 0.0
      %472 = vmatpush.msra.mxu0 0.0
      %473 = vmatpush.msra.mxu0 0.0
      %474 = vmatpush.msra.mxu0 0.0
      %475 = vmatpush.msra.mxu0 0.0
      %476 = vmatpush.msra.mxu0 %v439
      %477 = vmatmul.f32.gmra.mxu0 %v433
      %v478 = vpop.f32.mrf.mxu0
      %v479 = vadd.f32 %v430, %v478
      %480 = vdwg.mxu0
      %481 = vrot.lane.b32.xlu0 %v359, 16
      %v482 = vpop.permute.xlu0 %481
      %483 = vrot.lane.b32.xlu0 %v360, 16
      %v484 = vpop.permute.xlu0 %483
      %vm485 = vcmp.lt.s32.totalorder %v368, 16
      %v486 = vsel %vm485, %v482, %v484
      %v487 = vsel %vm485, %v484, %v482
      %s488 = scalar_lea.vmem %s7, 2
      %v489 = vld [vmem:[%s488] sm:$0x3]
      %v491 = vperm.slane %v489, 0
      %v492 = vperm.slane %v489, 1
      %v495 = vmul.f32 %v487, %v491
      %v496 = vmul.f32 %v486, %v492
      %s497 = scalar_lea.vmem %s3, 2
      %v498 = vld [vmem:[%s497] sm:$0x3]
      %v500 = vsel %vm381, %v498, 0
      %v503 = vsel %vm385, %v495, 0
      %v506 = vsel %vm385, %v496, 0
      %508 = vmatpush.msra.mxu0 0.0
      %509 = vmatpush.msra.mxu0 0.0
      %510 = vmatpush.msra.mxu0 0.0
      %511 = vmatpush.msra.mxu0 0.0
      %512 = vmatpush.msra.mxu0 0.0
      %513 = vmatpush.msra.mxu0 0.0
      %514 = vmatpush.msra.mxu0 0.0
      %515 = vmatpush.msra.mxu0 0.0
      %516 = vmatpush.msra.mxu0 0.0
      %517 = vmatpush.msra.mxu0 0.0
      %518 = vmatpush.msra.mxu0 0.0
      %519 = vmatpush.msra.mxu0 0.0
      %520 = vmatpush.msra.mxu0 0.0
      %521 = vmatpush.msra.mxu0 0.0
      %522 = vmatpush.msra.mxu0 0.0
      %523 = vmatpush.msra.mxu0 %v503
      %524 = vmatmul.f32.gmra.mxu0 %v500
      %v525 = vpop.f32.mrf.mxu0
      %v526 = vadd.f32 0.0, %v525
      %527 = vdwg.mxu0
      %528 = vmatpush.msra.mxu0 0.0
      %529 = vmatpush.msra.mxu0 0.0
      %530 = vmatpush.msra.mxu0 0.0
      %531 = vmatpush.msra.mxu0 0.0
      %532 = vmatpush.msra.mxu0 0.0
      %533 = vmatpush.msra.mxu0 0.0
      %534 = vmatpush.msra.mxu0 0.0
      %535 = vmatpush.msra.mxu0 0.0
      %536 = vmatpush.msra.mxu0 0.0
      %537 = vmatpush.msra.mxu0 0.0
      %538 = vmatpush.msra.mxu0 0.0
      %539 = vmatpush.msra.mxu0 0.0
      %540 = vmatpush.msra.mxu0 0.0
      %541 = vmatpush.msra.mxu0 0.0
      %542 = vmatpush.msra.mxu0 0.0
      %543 = vmatpush.msra.mxu0 %v506
      %544 = vmatmul.f32.gmra.mxu0 %v500
      %v545 = vpop.f32.mrf.mxu0
      %v546 = vadd.f32 0.0, %v545
      %547 = vdwg.mxu0
      %v548 = vadd.f32 %v459, %v526
      %v549 = vadd.f32 %v479, %v546
      %550 = vrot.lane.b32.xlu0 %v359, 15
      %v551 = vpop.permute.xlu0 %550
      %552 = vrot.lane.b32.xlu0 %v360, 15
      %v553 = vpop.permute.xlu0 %552
      %vm554 = vcmp.lt.s32.totalorder %v368, 15
      %v555 = vsel %vm554, %v551, %v553
      %v556 = vsel %vm554, %v553, %v551
      %s557 = scalar_lea.vmem %s7, 4
      %v558 = vld [vmem:[%s557] sm:$0x3]
      %v560 = vperm.slane %v558, 0
      %v561 = vperm.slane %v558, 1
      %v564 = vmul.f32 %v556, %v560
      %v565 = vmul.f32 %v555, %v561
      %s566 = scalar_lea.vmem %s3, 4
      %v567 = vld [vmem:[%s566] sm:$0x3]
      %v569 = vsel %vm381, %v567, 0
      %v572 = vsel %vm385, %v564, 0
      %v575 = vsel %vm385, %v565, 0
      %577 = vmatpush.msra.mxu0 0.0
      %578 = vmatpush.msra.mxu0 0.0
      %579 = vmatpush.msra.mxu0 0.0
      %580 = vmatpush.msra.mxu0 0.0
      %581 = vmatpush.msra.mxu0 0.0
      %582 = vmatpush.msra.mxu0 0.0
      %583 = vmatpush.msra.mxu0 0.0
      %584 = vmatpush.msra.mxu0 0.0
      %585 = vmatpush.msra.mxu0 0.0
      %586 = vmatpush.msra.mxu0 0.0
      %587 = vmatpush.msra.mxu0 0.0
      %588 = vmatpush.msra.mxu0 0.0
      %589 = vmatpush.msra.mxu0 0.0
      %590 = vmatpush.msra.mxu0 0.0
      %591 = vmatpush.msra.mxu0 0.0
      %592 = vmatpush.msra.mxu0 %v572
      %593 = vmatmul.f32.gmra.mxu0 %v569
      %v594 = vpop.f32.mrf.mxu0
      %v595 = vadd.f32 0.0, %v594
      %596 = vdwg.mxu0
      %597 = vmatpush.msra.mxu0 0.0
      %598 = vmatpush.msra.mxu0 0.0
      %599 = vmatpush.msra.mxu0 0.0
      %600 = vmatpush.msra.mxu0 0.0
      %601 = vmatpush.msra.mxu0 0.0
      %602 = vmatpush.msra.mxu0 0.0
      %603 = vmatpush.msra.mxu0 0.0
      %604 = vmatpush.msra.mxu0 0.0
      %605 = vmatpush.msra.mxu0 0.0
      %606 = vmatpush.msra.mxu0 0.0
      %607 = vmatpush.msra.mxu0 0.0
      %608 = vmatpush.msra.mxu0 0.0
      %609 = vmatpush.msra.mxu0 0.0
      %610 = vmatpush.msra.mxu0 0.0
      %611 = vmatpush.msra.mxu0 0.0
      %612 = vmatpush.msra.mxu0 %v575
      %613 = vmatmul.f32.gmra.mxu0 %v569
      %v614 = vpop.f32.mrf.mxu0
      %v615 = vadd.f32 0.0, %v614
      %616 = vdwg.mxu0
      %v617 = vadd.f32 %v548, %v595
      %v618 = vadd.f32 %v549, %v615
      %619 = vrot.lane.b32.xlu0 %v359, 1
      %v620 = vpop.permute.xlu0 %619
      %621 = vrot.lane.b32.xlu0 %v360, 1
      %v622 = vpop.permute.xlu0 %621
      %vm623 = vcmp.lt.s32.totalorder %v368, 1
      %v624 = vsel %vm623, %v620, %v622
      %v625 = vsel %vm623, %v622, %v620
      %s626 = scalar_lea.vmem %s7, 6
      %v627 = vld [vmem:[%s626] sm:$0x3]
      %v629 = vperm.slane %v627, 0
      %v630 = vperm.slane %v627, 1
      %v633 = vmul.f32 %v625, %v629
      %v634 = vmul.f32 %v624, %v630
      %s635 = scalar_lea.vmem %s3, 6
      %v636 = vld [vmem:[%s635] sm:$0x3]
      %v638 = vsel %vm381, %v636, 0
      %v641 = vsel %vm385, %v633, 0
      %v644 = vsel %vm385, %v634, 0
      %646 = vmatpush.msra.mxu0 0.0
      %647 = vmatpush.msra.mxu0 0.0
      %648 = vmatpush.msra.mxu0 0.0
      %649 = vmatpush.msra.mxu0 0.0
      %650 = vmatpush.msra.mxu0 0.0
      %651 = vmatpush.msra.mxu0 0.0
      %652 = vmatpush.msra.mxu0 0.0
      %653 = vmatpush.msra.mxu0 0.0
      %654 = vmatpush.msra.mxu0 0.0
      %655 = vmatpush.msra.mxu0 0.0
      %656 = vmatpush.msra.mxu0 0.0
      %657 = vmatpush.msra.mxu0 0.0
      %658 = vmatpush.msra.mxu0 0.0
      %659 = vmatpush.msra.mxu0 0.0
      %660 = vmatpush.msra.mxu0 0.0
      %661 = vmatpush.msra.mxu0 %v641
      %662 = vmatmul.f32.gmra.mxu0 %v638
      %v663 = vpop.f32.mrf.mxu0
      %v664 = vadd.f32 0.0, %v663
      %665 = vdwg.mxu0
      %666 = vmatpush.msra.mxu0 0.0
      %667 = vmatpush.msra.mxu0 0.0
      %668 = vmatpush.msra.mxu0 0.0
      %669 = vmatpush.msra.mxu0 0.0
      %670 = vmatpush.msra.mxu0 0.0
      %671 = vmatpush.msra.mxu0 0.0
      %672 = vmatpush.msra.mxu0 0.0
      %673 = vmatpush.msra.mxu0 0.0
      %674 = vmatpush.msra.mxu0 0.0
      %675 = vmatpush.msra.mxu0 0.0
      %676 = vmatpush.msra.mxu0 0.0
      %677 = vmatpush.msra.mxu0 0.0
      %678 = vmatpush.msra.mxu0 0.0
      %679 = vmatpush.msra.mxu0 0.0
      %680 = vmatpush.msra.mxu0 0.0
      %681 = vmatpush.msra.mxu0 %v644
      %682 = vmatmul.f32.gmra.mxu0 %v638
      %v683 = vpop.f32.mrf.mxu0
      %v684 = vadd.f32 0.0, %v683
      %685 = vdwg.mxu0
      %v686 = vadd.f32 %v617, %v664
      %v687 = vadd.f32 %v618, %v684
      %688 = vrot.lane.b32.xlu0 %v359, 127
      %v689 = vpop.permute.xlu0 %688
      %690 = vrot.lane.b32.xlu0 %v360, 127
      %v691 = vpop.permute.xlu0 %690
      %vm692 = vcmp.lt.s32.totalorder %v368, 127
      %v693 = vsel %vm692, %v689, %v691
      %v694 = vsel %vm692, %v691, %v689
      %s695 = scalar_lea.vmem %s7, 10
      %v696 = vld [vmem:[%s695] sm:$0x3]
      %v698 = vperm.slane %v696, 0
      %v699 = vperm.slane %v696, 1
      %v702 = vmul.f32 %v693, %v698
      %v703 = vmul.f32 %v694, %v699
      %s704 = scalar_lea.vmem %s3, 10
      %v705 = vld [vmem:[%s704] sm:$0x3]
      %v707 = vsel %vm381, %v705, 0
      %v710 = vsel %vm385, %v702, 0
      %v713 = vsel %vm385, %v703, 0
      %715 = vmatpush.msra.mxu0 0.0
      %716 = vmatpush.msra.mxu0 0.0
      %717 = vmatpush.msra.mxu0 0.0
      %718 = vmatpush.msra.mxu0 0.0
      %719 = vmatpush.msra.mxu0 0.0
      %720 = vmatpush.msra.mxu0 0.0
      %721 = vmatpush.msra.mxu0 0.0
      %722 = vmatpush.msra.mxu0 0.0
      %723 = vmatpush.msra.mxu0 0.0
      %724 = vmatpush.msra.mxu0 0.0
      %725 = vmatpush.msra.mxu0 0.0
      %726 = vmatpush.msra.mxu0 0.0
      %727 = vmatpush.msra.mxu0 0.0
      %728 = vmatpush.msra.mxu0 0.0
      %729 = vmatpush.msra.mxu0 0.0
      %730 = vmatpush.msra.mxu0 %v710
      %731 = vmatmul.f32.gmra.mxu0 %v707
      %v732 = vpop.f32.mrf.mxu0
      %v733 = vadd.f32 0.0, %v732
      %734 = vdwg.mxu0
      %735 = vmatpush.msra.mxu0 0.0
      %736 = vmatpush.msra.mxu0 0.0
      %737 = vmatpush.msra.mxu0 0.0
      %738 = vmatpush.msra.mxu0 0.0
      %739 = vmatpush.msra.mxu0 0.0
      %740 = vmatpush.msra.mxu0 0.0
      %741 = vmatpush.msra.mxu0 0.0
      %742 = vmatpush.msra.mxu0 0.0
      %743 = vmatpush.msra.mxu0 0.0
      %744 = vmatpush.msra.mxu0 0.0
      %745 = vmatpush.msra.mxu0 0.0
      %746 = vmatpush.msra.mxu0 0.0
      %747 = vmatpush.msra.mxu0 0.0
      %748 = vmatpush.msra.mxu0 0.0
      %749 = vmatpush.msra.mxu0 0.0
      %750 = vmatpush.msra.mxu0 %v713
      %751 = vmatmul.f32.gmra.mxu0 %v707
      %v752 = vpop.f32.mrf.mxu0
      %v753 = vadd.f32 0.0, %v752
      %754 = vdwg.mxu0
      %v755 = vadd.f32 %v686, %v733
      %v756 = vadd.f32 %v687, %v753
      %757 = vrot.lane.b32.xlu0 %v359, 113
      %v758 = vpop.permute.xlu0 %757
      %759 = vrot.lane.b32.xlu0 %v360, 113
      %v760 = vpop.permute.xlu0 %759
      %vm761 = vcmp.lt.s32.totalorder %v368, 113
      %v762 = vsel %vm761, %v758, %v760
      %v763 = vsel %vm761, %v760, %v758
      %s764 = scalar_lea.vmem %s7, 12
      %v765 = vld [vmem:[%s764] sm:$0x3]
      %v767 = vperm.slane %v765, 0
      %v768 = vperm.slane %v765, 1
      %v771 = vmul.f32 %v762, %v767
      %v772 = vmul.f32 %v763, %v768
      %s773 = scalar_lea.vmem %s3, 12
      %v774 = vld [vmem:[%s773] sm:$0x3]
      %v776 = vsel %vm381, %v774, 0
      %v779 = vsel %vm385, %v771, 0
      %v782 = vsel %vm385, %v772, 0
      %784 = vmatpush.msra.mxu0 0.0
      %785 = vmatpush.msra.mxu0 0.0
      %786 = vmatpush.msra.mxu0 0.0
      %787 = vmatpush.msra.mxu0 0.0
      %788 = vmatpush.msra.mxu0 0.0
      %789 = vmatpush.msra.mxu0 0.0
      %790 = vmatpush.msra.mxu0 0.0
      %791 = vmatpush.msra.mxu0 0.0
      %792 = vmatpush.msra.mxu0 0.0
      %793 = vmatpush.msra.mxu0 0.0
      %794 = vmatpush.msra.mxu0 0.0
      %795 = vmatpush.msra.mxu0 0.0
      %796 = vmatpush.msra.mxu0 0.0
      %797 = vmatpush.msra.mxu0 0.0
      %798 = vmatpush.msra.mxu0 0.0
      %799 = vmatpush.msra.mxu0 %v779
      %800 = vmatmul.f32.gmra.mxu0 %v776
      %v801 = vpop.f32.mrf.mxu0
      %v802 = vadd.f32 0.0, %v801
      %803 = vdwg.mxu0
      %804 = vmatpush.msra.mxu0 0.0
      %805 = vmatpush.msra.mxu0 0.0
      %806 = vmatpush.msra.mxu0 0.0
      %807 = vmatpush.msra.mxu0 0.0
      %808 = vmatpush.msra.mxu0 0.0
      %809 = vmatpush.msra.mxu0 0.0
      %810 = vmatpush.msra.mxu0 0.0
      %811 = vmatpush.msra.mxu0 0.0
      %812 = vmatpush.msra.mxu0 0.0
      %813 = vmatpush.msra.mxu0 0.0
      %814 = vmatpush.msra.mxu0 0.0
      %815 = vmatpush.msra.mxu0 0.0
      %816 = vmatpush.msra.mxu0 0.0
      %817 = vmatpush.msra.mxu0 0.0
      %818 = vmatpush.msra.mxu0 0.0
      %819 = vmatpush.msra.mxu0 %v782
      %820 = vmatmul.f32.gmra.mxu0 %v776
      %v821 = vpop.f32.mrf.mxu0
      %v822 = vadd.f32 0.0, %v821
      %823 = vdwg.mxu0
      %v824 = vadd.f32 %v755, %v802
      %v825 = vadd.f32 %v756, %v822
      %826 = vrot.lane.b32.xlu0 %v359, 112
      %v827 = vpop.permute.xlu0 %826
      %828 = vrot.lane.b32.xlu0 %v360, 112
      %v829 = vpop.permute.xlu0 %828
      %vm830 = vcmp.lt.s32.totalorder %v368, 112
      %v831 = vsel %vm830, %v827, %v829
      %v832 = vsel %vm830, %v829, %v827
      %s833 = scalar_lea.vmem %s7, 14
      %v834 = vld [vmem:[%s833] sm:$0x3]
      %v836 = vperm.slane %v834, 0
      %v837 = vperm.slane %v834, 1
      %v840 = vmul.f32 %v831, %v836
      %v841 = vmul.f32 %v832, %v837
      %s842 = scalar_lea.vmem %s3, 14
      %v843 = vld [vmem:[%s842] sm:$0x3]
      %v845 = vsel %vm381, %v843, 0
      %v848 = vsel %vm385, %v840, 0
      %v851 = vsel %vm385, %v841, 0
      %853 = vmatpush.msra.mxu0 0.0
      %854 = vmatpush.msra.mxu0 0.0
      %855 = vmatpush.msra.mxu0 0.0
      %856 = vmatpush.msra.mxu0 0.0
      %857 = vmatpush.msra.mxu0 0.0
      %858 = vmatpush.msra.mxu0 0.0
      %859 = vmatpush.msra.mxu0 0.0
      %860 = vmatpush.msra.mxu0 0.0
      %861 = vmatpush.msra.mxu0 0.0
      %862 = vmatpush.msra.mxu0 0.0
      %863 = vmatpush.msra.mxu0 0.0
      %864 = vmatpush.msra.mxu0 0.0
      %865 = vmatpush.msra.mxu0 0.0
      %866 = vmatpush.msra.mxu0 0.0
      %867 = vmatpush.msra.mxu0 0.0
      %868 = vmatpush.msra.mxu0 %v848
      %869 = vmatmul.f32.gmra.mxu0 %v845
      %v870 = vpop.f32.mrf.mxu0
      %v871 = vadd.f32 0.0, %v870
      %872 = vdwg.mxu0
      %873 = vmatpush.msra.mxu0 0.0
      %874 = vmatpush.msra.mxu0 0.0
      %875 = vmatpush.msra.mxu0 0.0
      %876 = vmatpush.msra.mxu0 0.0
      %877 = vmatpush.msra.mxu0 0.0
      %878 = vmatpush.msra.mxu0 0.0
      %879 = vmatpush.msra.mxu0 0.0
      %880 = vmatpush.msra.mxu0 0.0
      %881 = vmatpush.msra.mxu0 0.0
      %882 = vmatpush.msra.mxu0 0.0
      %883 = vmatpush.msra.mxu0 0.0
      %884 = vmatpush.msra.mxu0 0.0
      %885 = vmatpush.msra.mxu0 0.0
      %886 = vmatpush.msra.mxu0 0.0
      %887 = vmatpush.msra.mxu0 0.0
      %888 = vmatpush.msra.mxu0 %v851
      %889 = vmatmul.f32.gmra.mxu0 %v845
      %v890 = vpop.f32.mrf.mxu0
      %v891 = vadd.f32 0.0, %v890
      %892 = vdwg.mxu0
      %v893 = vadd.f32 %v824, %v871
      %v894 = vadd.f32 %v825, %v891
      %895 = vrot.lane.b32.xlu0 %v359, 111
      %v896 = vpop.permute.xlu0 %895
      %897 = vrot.lane.b32.xlu0 %v360, 111
      %v898 = vpop.permute.xlu0 %897
      %vm899 = vcmp.lt.s32.totalorder %v368, 111
      %v900 = vsel %vm899, %v896, %v898
      %v901 = vsel %vm899, %v898, %v896
      %s902 = scalar_lea.vmem %s7, 16
      %v903 = vld [vmem:[%s902] sm:$0x3]
      %v905 = vperm.slane %v903, 0
      %v906 = vperm.slane %v903, 1
      %v909 = vmul.f32 %v900, %v905
      %v910 = vmul.f32 %v901, %v906
      %s911 = scalar_lea.vmem %s3, 16
      %v912 = vld [vmem:[%s911] sm:$0x3]
      %v914 = vsel %vm381, %v912, 0
      %v917 = vsel %vm385, %v909, 0
      %v920 = vsel %vm385, %v910, 0
      %922 = vmatpush.msra.mxu0 0.0
      %923 = vmatpush.msra.mxu0 0.0
      %924 = vmatpush.msra.mxu0 0.0
      %925 = vmatpush.msra.mxu0 0.0
      %926 = vmatpush.msra.mxu0 0.0
      %927 = vmatpush.msra.mxu0 0.0
      %928 = vmatpush.msra.mxu0 0.0
      %929 = vmatpush.msra.mxu0 0.0
      %930 = vmatpush.msra.mxu0 0.0
      %931 = vmatpush.msra.mxu0 0.0
      %932 = vmatpush.msra.mxu0 0.0
      %933 = vmatpush.msra.mxu0 0.0
      %934 = vmatpush.msra.mxu0 0.0
      %935 = vmatpush.msra.mxu0 0.0
      %936 = vmatpush.msra.mxu0 0.0
      %937 = vmatpush.msra.mxu0 %v917
      %938 = vmatmul.f32.gmra.mxu0 %v914
      %v939 = vpop.f32.mrf.mxu0
      %v940 = vadd.f32 0.0, %v939
      %941 = vdwg.mxu0
      %942 = vmatpush.msra.mxu0 0.0
      %943 = vmatpush.msra.mxu0 0.0
      %944 = vmatpush.msra.mxu0 0.0
      %945 = vmatpush.msra.mxu0 0.0
      %946 = vmatpush.msra.mxu0 0.0
      %947 = vmatpush.msra.mxu0 0.0
      %948 = vmatpush.msra.mxu0 0.0
      %949 = vmatpush.msra.mxu0 0.0
      %950 = vmatpush.msra.mxu0 0.0
      %951 = vmatpush.msra.mxu0 0.0
      %952 = vmatpush.msra.mxu0 0.0
      %953 = vmatpush.msra.mxu0 0.0
      %954 = vmatpush.msra.mxu0 0.0
      %955 = vmatpush.msra.mxu0 0.0
      %956 = vmatpush.msra.mxu0 0.0
      %957 = vmatpush.msra.mxu0 %v920
      %958 = vmatmul.f32.gmra.mxu0 %v914
      %v959 = vpop.f32.mrf.mxu0
      %v960 = vadd.f32 0.0, %v959
      %961 = vdwg.mxu0
      %v962 = vadd.f32 %v893, %v940
      %v963 = vadd.f32 %v894, %v960
      %v964 = vld [vmem:[%s4] sm:$0x3]
      %966 = vset.pattern.permute.xlu0 0
      %967 = vperm.xlu0 %966, %v964
      %v968 = vpop.permute.xlu0 %967
      %v970 = vadd.f32 %v962, %v968
      %v971 = vadd.f32 %v963, %v968
      %v972 = vmax.f32 %v970, 0.0
      %v973 = vmax.f32 %v971, 0.0
      %v974 = vld [vmem:[%s5] sm:$0xff]
      %v975 = vld [vmem:[%s6] sm:$0xff]
      %977 = vset.pattern.permute.xlu0 0
      %978 = vperm.xlu0 %977, %v975
      %v979 = vpop.permute.xlu0 %978
      %v982 = vsel %vm381, %v974, 0
      %v985 = vsel %vm385, %v972, 0
      %v988 = vsel %vm385, %v973, 0
      %990 = vmatpush.msra.mxu0 0.0
      %991 = vmatpush.msra.mxu0 0.0
      %992 = vmatpush.msra.mxu0 0.0
      %993 = vmatpush.msra.mxu0 0.0
      %994 = vmatpush.msra.mxu0 0.0
      %995 = vmatpush.msra.mxu0 0.0
      %996 = vmatpush.msra.mxu0 0.0
      %997 = vmatpush.msra.mxu0 0.0
      %998 = vmatpush.msra.mxu0 0.0
      %999 = vmatpush.msra.mxu0 0.0
      %1000 = vmatpush.msra.mxu0 0.0
      %1001 = vmatpush.msra.mxu0 0.0
      %1002 = vmatpush.msra.mxu0 0.0
      %1003 = vmatpush.msra.mxu0 0.0
      %1004 = vmatpush.msra.mxu0 0.0
      %1005 = vmatpush.msra.mxu0 %v985
      %1006 = vmatmul.f32.gmra.mxu0 %v982
      %v1007 = vpop.f32.mrf.mxu0
      %v1008 = vadd.f32 %v979, %v1007
      %1009 = vdwg.mxu0
      %1010 = vmatpush.msra.mxu0 0.0
      %1011 = vmatpush.msra.mxu0 0.0
      %1012 = vmatpush.msra.mxu0 0.0
      %1013 = vmatpush.msra.mxu0 0.0
      %1014 = vmatpush.msra.mxu0 0.0
      %1015 = vmatpush.msra.mxu0 0.0
      %1016 = vmatpush.msra.mxu0 0.0
      %1017 = vmatpush.msra.mxu0 0.0
      %1018 = vmatpush.msra.mxu0 0.0
      %1019 = vmatpush.msra.mxu0 0.0
      %1020 = vmatpush.msra.mxu0 0.0
      %1021 = vmatpush.msra.mxu0 0.0
      %1022 = vmatpush.msra.mxu0 0.0
      %1023 = vmatpush.msra.mxu0 0.0
      %1024 = vmatpush.msra.mxu0 0.0
      %1025 = vmatpush.msra.mxu0 %v988
      %1026 = vmatmul.f32.gmra.mxu0 %v982
      %v1027 = vpop.f32.mrf.mxu0
      %v1028 = vadd.f32 %v979, %v1027
      %1029 = vdwg.mxu0
      %v1030 = vadd.f32 %v1008, %v306
      %v1031 = vadd.f32 %v1028, %v307
      %v1032 = vmax.f32 %v1030, 0.0
      %v1033 = vmax.f32 %v1031, 0.0
      %1034 = vst [vmem:[%s305] sm:$0xff] %v1032
      %1035 = vst [vmem:[%s305 + $0x8] sm:$0xff] %v1033
      %p1036 = scmp.lt.s32.totalorder %s19, 1
      %s1037 = scalar_select %p1036, %s19, 1
      %s1038 = smul.addr %s1037, 2
      %s1039 = smul.addr %s1038, 8
      %s1040 = scalar_lea.vmem %s8, %s1039
      // Predicated region
      $region53: #{btnk2_forward.1} parent=51 // pred_check
        %p1041 = pneg %p210
      $region54: #{btnk2_forward.1} parent=51 // pred_check_branch
        %1043 = sbr.rel (%p1041) target = $region56
      $region55: #{btnk2_forward.1} parent=51 // pred_region
        _
      $region56: #{btnk2_forward.1} parent=51 // pred_fallthru
        _
    $region52: #{btnk2_forward.1} parent=5 // pred_fallthru
      _
    %p1044 = scmp.le.s32.totalorder 2, %s14
    // Predicated region
    $region57: #{btnk2_forward.1} parent=5 // pred_check
      %p1045 = pneg %p1044
    $region58: #{btnk2_forward.1} parent=5 // pred_check_branch
      %1047 = sbr.rel (%p1045) target = $region60
    $region59: #{btnk2_forward.1} parent=5 // pred_region
      %s1048 = ssub.s32 %s14, 2
      // Predicated region
      $region61: #{btnk2_forward.1} parent=59 // pred_check
        %p1049 = pneg %p216
      $region62: #{btnk2_forward.1} parent=59 // pred_check_branch
        %1051 = sbr.rel (%p1049) target = $region64
      $region63: #{btnk2_forward.1} parent=59 // pred_region
        %p1052 = scmp.lt.s32.totalorder %s20, 1
        %s1053 = scalar_select %p1052, %s20, 1
        %s1054 = smul.addr %s1053, 2
        %s1055 = smul.addr %s1054, 8
        %s1056 = scalar_lea.vmem %s8, %s1055
      $region64: #{btnk2_forward.1} parent=59 // pred_fallthru
        _
    $region60: #{btnk2_forward.1} parent=5 // pred_fallthru
      _
  $region6: #{btnk2_forward.1} parent=0 // loop_footer
    %s18 = sadd.s32 1, %s14
  $region7: #{btnk2_forward.1} parent=0 // loop_footer_branch
    %13 = sbr.rel target = $region3
  $region8: #{btnk2_forward.1} parent=0 // loop_exit
    _

</llo_original>
